<compile_context>
chip_gen: v7x
topology: tpu7x:2x2x1
jax: 0.10.0
libtpu: 0.0.40
codegen_flags: <defaults>
</compile_context>

<pallas_src>
import jax
import jax.numpy as jnp
from jax.experimental import pallas as pl
from jax.experimental.pallas import tpu as pltpu

LATENT_DIM = 20
HIDDEN_DIM = 128
OUT_DIM = 28 * 28  # 784


def _round_up(x: int, m: int) -> int:
    return ((x + m - 1) // m) * m


def _choose_tb(batch: int, cap: int = 1024) -> int:
    """Batch tile: full batch if tiny, else a multiple of 8 giving >= 2 grid
    steps (so both v7x TensorCores get work), capped for VMEM (v5e-safe)."""
    if batch <= 8:
        return batch  # single block == full array dim (legal block shape)
    tb = _round_up(pl.cdiv(batch, 2), 8)
    return min(tb, cap)


def decoder_kernel(x_ref, w1_ref, b1_ref, w2_ref, b2_ref, o_ref):
    # fc1: (TB, 20) @ (20, 128) -> f32 accumulate; bias in f32.
    x = x_ref[...].astype(jnp.bfloat16)
    h = jnp.dot(x, w1_ref[...], preferred_element_type=jnp.float32)
    h = h + b1_ref[...]
    # fc2: (TB, 128) @ (128, 784) -> f32 accumulate; bias in f32.
    y = jnp.dot(h.astype(jnp.bfloat16), w2_ref[...],
                preferred_element_type=jnp.float32)
    y = y + b2_ref[...]
    # Numerically stable sigmoid with a single transcendental (tanh on EUP).
    o_ref[...] = (0.5 * jnp.tanh(0.5 * y) + 0.5).astype(o_ref.dtype)


def decoder_forward(x, w1_b, b1, w2_b, b2, *, tb_cap: int = 1024):
    """x: (B, 20) f32; w1_b:(20,128) bf16; b1:(1,128) f32;
       w2_b:(128,784) bf16; b2:(1,784) f32.

    Returns (B, 784) float32 = sigmoid((x @ w1 + b1) @ w2 + b2).
    """
    B = x.shape[0]
    TB = _choose_tb(B, tb_cap)
    grid = (pl.cdiv(B, TB),)
    const = lambda i: (0, 0)  # weights/biases: same block every step (VMEM-resident)

    return pl.pallas_call(
        decoder_kernel,
        out_shape=jax.ShapeDtypeStruct((B, OUT_DIM), jnp.float32),
        grid=grid,
        in_specs=[
            pl.BlockSpec((TB, LATENT_DIM), lambda i: (i, 0)),   # x tile
            pl.BlockSpec((LATENT_DIM, HIDDEN_DIM), const),      # w1 (bf16)
            pl.BlockSpec((1, HIDDEN_DIM), const),               # b1 (f32)
            pl.BlockSpec((HIDDEN_DIM, OUT_DIM), const),         # w2 (bf16)
            pl.BlockSpec((1, OUT_DIM), const),                  # b2 (f32)
        ],
        out_specs=pl.BlockSpec((TB, OUT_DIM), lambda i: (i, 0)),
        compiler_params=pltpu.CompilerParams(
            dimension_semantics=("parallel",)),
    )(x, w1_b, b1, w2_b, b2)


def init_params(key):
    """Deterministic init mimicking nn.Linear's uniform(-1/sqrt(in), 1/sqrt(in)).
    Returns f32 reference parameters."""
    k1, k2, k3, k4 = jax.random.split(key, 4)
    bound1 = 1.0 / (LATENT_DIM ** 0.5)
    bound2 = 1.0 / (HIDDEN_DIM ** 0.5)
    w1 = jax.random.uniform(k1, (LATENT_DIM, HIDDEN_DIM), jnp.float32, -bound1, bound1)
    b1 = jax.random.uniform(k2, (1, HIDDEN_DIM), jnp.float32, -bound1, bound1)
    w2 = jax.random.uniform(k3, (HIDDEN_DIM, OUT_DIM), jnp.float32, -bound2, bound2)
    b2 = jax.random.uniform(k4, (1, OUT_DIM), jnp.float32, -bound2, bound2)
    return w1, b1, w2, b2


def prepare_params(w1, b1, w2, b2):
    """One-time (init-time) kernel-ready params: bf16 weights, f32 biases.
    Hoisted out of the per-call forward path."""
    return w1.astype(jnp.bfloat16), b1, w2.astype(jnp.bfloat16), b2


def _reference(x, w1, b1, w2, b2):
    return jax.nn.sigmoid((x @ w1 + b1) @ w2 + b2)


if __name__ == "__main__":
    key = jax.random.PRNGKey(0)
    kx, kp = jax.random.split(key)
    w1, b1, w2, b2 = init_params(kp)
    w1_b, b1_p, w2_b, b2_p = prepare_params(w1, b1, w2, b2)

    # Small-batch case consistent with the module (B=2): single full-batch block.
    B = 2
    x = jax.random.normal(kx, (B, LATENT_DIM), jnp.float32)
    out = jax.block_until_ready(decoder_forward(x, w1_b, b1_p, w2_b, b2_p))
    ref = _reference(x, w1, b1, w2, b2)
    assert out.shape == (B, OUT_DIM)
    # bf16 matmul inputs give ~1e-3-level relative error vs the f32 reference.
    assert jnp.allclose(out, ref, atol=2e-2), float(jnp.max(jnp.abs(out - ref)))

    # Larger, non-multiple batch: exercises the batch grid + ragged last tile.
    B2 = 1000
    x2 = jax.random.normal(kx, (B2, LATENT_DIM), jnp.float32)
    out2 = jax.block_until_ready(decoder_forward(x2, w1_b, b1_p, w2_b, b2_p))
    ref2 = _reference(x2, w1, b1, w2, b2)
    assert out2.shape == (B2, OUT_DIM)
    assert jnp.allclose(out2, ref2, atol=2e-2), float(jnp.max(jnp.abs(out2 - ref2)))

    print("KERNEL_OK")
</pallas_src>

<mosaic_0001>
module attributes {stable_mosaic.version = 11 : i64} {
  func.func @decoder_kernel(%arg0: i32, %arg1: memref<2x20xf32, #tpu.memory_space<vmem>>, %arg2: memref<20x128xbf16, #tpu.memory_space<vmem>>, %arg3: memref<1x128xf32, #tpu.memory_space<vmem>>, %arg4: memref<128x784xbf16, #tpu.memory_space<vmem>>, %arg5: memref<1x784xf32, #tpu.memory_space<vmem>>, %arg6: memref<2x784xf32, #tpu.memory_space<vmem>>) attributes {dimension_semantics = [#tpu.dimension_semantics<parallel>], iteration_bounds = array<i64: 1>, scalar_prefetch = 0 : i64, scratch_operands = 0 : i64, tpu.core_type = #tpu.core_type<tc>, window_params = [{transform_indices = @transform_0, window_bounds = array<i64: 2, 20>}, {pipeline_mode = #tpu.pipeline_mode<synchronous>, transform_indices = @transform_1, window_bounds = array<i64: 20, 128>}, {pipeline_mode = #tpu.pipeline_mode<synchronous>, transform_indices = @transform_2, window_bounds = array<i64: 1, 128>}, {pipeline_mode = #tpu.pipeline_mode<synchronous>, transform_indices = @transform_3, window_bounds = array<i64: 128, 784>}, {pipeline_mode = #tpu.pipeline_mode<synchronous>, transform_indices = @transform_4, window_bounds = array<i64: 1, 784>}, {transform_indices = @transform_5, window_bounds = array<i64: 2, 784>}]} {
    %c0 = arith.constant 0 : index
    %c0_0 = arith.constant 0 : index
    %0 = vector.load %arg1[%c0, %c0_0] : memref<2x20xf32, #tpu.memory_space<vmem>>, vector<2x20xf32>
    %1 = arith.truncf %0 : vector<2x20xf32> to vector<2x20xbf16>
    %c0_1 = arith.constant 0 : index
    %c0_2 = arith.constant 0 : index
    %2 = vector.load %arg2[%c0_1, %c0_2] : memref<20x128xbf16, #tpu.memory_space<vmem>>, vector<20x128xbf16>
    %cst = arith.constant dense<0.000000e+00> : vector<2x128xf32>
    %3 = tpu.matmul %1, %2, %cst {dimension_numbers = #tpu.dot_dimension_numbers<[1], [0], [0], [1], [0, 0, 1, 1], [], []>} : vector<2x20xbf16>, vector<20x128xbf16>, vector<2x128xf32> -> vector<2x128xf32>
    %c0_3 = arith.constant 0 : index
    %c0_4 = arith.constant 0 : index
    %4 = vector.load %arg3[%c0_3, %c0_4] : memref<1x128xf32, #tpu.memory_space<vmem>>, vector<1x128xf32>
    %5 = vector.broadcast %4 : vector<1x128xf32> to vector<2x128xf32>
    %6 = arith.addf %3, %5 : vector<2x128xf32>
    %7 = arith.truncf %6 : vector<2x128xf32> to vector<2x128xbf16>
    %c0_5 = arith.constant 0 : index
    %c0_6 = arith.constant 0 : index
    %8 = vector.load %arg4[%c0_5, %c0_6] : memref<128x784xbf16, #tpu.memory_space<vmem>>, vector<128x784xbf16>
    %cst_7 = arith.constant dense<0.000000e+00> : vector<2x784xf32>
    %9 = tpu.matmul %7, %8, %cst_7 {dimension_numbers = #tpu.dot_dimension_numbers<[1], [0], [0], [1], [0, 0, 1, 1], [], []>} : vector<2x128xbf16>, vector<128x784xbf16>, vector<2x784xf32> -> vector<2x784xf32>
    %c0_8 = arith.constant 0 : index
    %c0_9 = arith.constant 0 : index
    %10 = vector.load %arg5[%c0_8, %c0_9] : memref<1x784xf32, #tpu.memory_space<vmem>>, vector<1x784xf32>
    %11 = vector.broadcast %10 : vector<1x784xf32> to vector<2x784xf32>
    %12 = arith.addf %9, %11 : vector<2x784xf32>
    %cst_10 = arith.constant 5.000000e-01 : f32
    %13 = vector.broadcast %cst_10 : f32 to vector<2x784xf32>
    %14 = arith.mulf %13, %12 : vector<2x784xf32>
    %15 = math.tanh %14 : vector<2x784xf32>
    %cst_11 = arith.constant 5.000000e-01 : f32
    %16 = vector.broadcast %cst_11 : f32 to vector<2x784xf32>
    %17 = arith.mulf %16, %15 : vector<2x784xf32>
    %cst_12 = arith.constant 5.000000e-01 : f32
    %18 = vector.broadcast %cst_12 : f32 to vector<2x784xf32>
    %19 = arith.addf %17, %18 : vector<2x784xf32>
    %c0_13 = arith.constant 0 : index
    %c0_14 = arith.constant 0 : index
    %20 = vector.load %arg6[%c0_13, %c0_14] : memref<2x784xf32, #tpu.memory_space<vmem>>, vector<2x784xf32>
    tpu.vector_store %arg6[%c0_13, %c0_14], %19 {strides = array<i32>} : memref<2x784xf32, #tpu.memory_space<vmem>>, vector<2x784xf32>,
    return
  }
  func.func @transform_0(%arg0: i32) -> (i32, i32) {
    %c0_i32 = arith.constant 0 : i32
    %c0_i32_0 = arith.constant 0 : i32
    return %arg0, %c0_i32 : i32, i32
  }
  func.func @transform_1(%arg0: i32) -> (i32, i32) {
    %c0_i32 = arith.constant 0 : i32
    %c0_i32_0 = arith.constant 0 : i32
    %c0_i32_1 = arith.constant 0 : i32
    return %c0_i32, %c0_i32_0 : i32, i32
  }
  func.func @transform_2(%arg0: i32) -> (i32, i32) {
    %c0_i32 = arith.constant 0 : i32
    %c0_i32_0 = arith.constant 0 : i32
    %c0_i32_1 = arith.constant 0 : i32
    return %c0_i32, %c0_i32_0 : i32, i32
  }
  func.func @transform_3(%arg0: i32) -> (i32, i32) {
    %c0_i32 = arith.constant 0 : i32
    %c0_i32_0 = arith.constant 0 : i32
    %c0_i32_1 = arith.constant 0 : i32
    return %c0_i32, %c0_i32_0 : i32, i32
  }
  func.func @transform_4(%arg0: i32) -> (i32, i32) {
    %c0_i32 = arith.constant 0 : i32
    %c0_i32_0 = arith.constant 0 : i32
    %c0_i32_1 = arith.constant 0 : i32
    return %c0_i32, %c0_i32_0 : i32, i32
  }
  func.func @transform_5(%arg0: i32) -> (i32, i32) {
    %c0_i32 = arith.constant 0 : i32
    %c0_i32_0 = arith.constant 0 : i32
    return %arg0, %c0_i32 : i32, i32
  }
}

</mosaic_0001>

<llo_original>
// kernel: tpu_custom_call.1
$region0: #{tpu_custom_call.1}
  #allocation0 [shape = 'u32[]', space=smem, size = 0x4, offset = 0x4, fixed_abs, tag = 'smem constant byte address 0x4 - core index']
  #allocation1 [shape = 'u32[144,128]{1,0:T(1,128)}', space=vmem, size = 0x12000, scoped, tag = 'internal scratch']
  %s0 = inlined_call_operand.vmem [shape: f32[2,20], index: 0, kind: input, shape index: {}]
  %s1 = inlined_call_operand.vmem [shape: bf16[20,128], index: 1, kind: input, shape index: {}]
  %s2 = inlined_call_operand.vmem [shape: f32[1,128], index: 2, kind: input, shape index: {}]
  %s3 = inlined_call_operand.vmem [shape: bf16[128,784], index: 3, kind: input, shape index: {}]
  %s4 = inlined_call_operand.vmem [shape: f32[1,784], index: 4, kind: input, shape index: {}]
  %s5 = inlined_call_operand.hbm [shape: f32[2,784], index: 5, kind: output, shape index: {}]
  %s6 = sld [smem:[#allocation0]]
  $region30: #{tpu_custom_call.1} parent=0
    _
  %s8 = ssub.s32 1, %s6
  %s9 = scalar_select 0, %s8, %s6
  $region1: #{tpu_custom_call.1} parent=0
    #allocation2 [shape = 'u8[7168]{0}', space=vmem, size = 0x1c00, scoped, tag = 'output window, operand 0, single buffered']
    #allocation3 [shape = 's32[1]{0}', space=sflag, size = 0x4, scoped, tag = 'scoped memory for tpu_custom_call.1']
    %10 = vsyncpa [#allocation3], 0
    // Predicated region
    $region2: #{tpu_custom_call.1} parent=1 // pred_check
      _
    $region3: #{tpu_custom_call.1} parent=1 // pred_check_branch
      %12 = sbr.rel (0) target = $region5
    $region4: #{tpu_custom_call.1} parent=1 // pred_region
      _
    $region5: #{tpu_custom_call.1} parent=1 // pred_fallthru
      _
    // Predicated region
    $region6: #{tpu_custom_call.1} parent=1 // pred_check
      _
    $region7: #{tpu_custom_call.1} parent=1 // pred_check_branch
      %14 = sbr.rel (0) target = $region9
    $region8: #{tpu_custom_call.1} parent=1 // pred_region
      _
    $region9: #{tpu_custom_call.1} parent=1 // pred_fallthru
      _
    // Predicated region
    $region10: #{tpu_custom_call.1} parent=1 // pred_check
      _
    $region11: #{tpu_custom_call.1} parent=1 // pred_check_branch
      %16 = sbr.rel (0) target = $region13
    $region12: #{tpu_custom_call.1} parent=1 // pred_region
      _
    $region13: #{tpu_custom_call.1} parent=1 // pred_fallthru
      _
    // Predicated region
    $region14: #{tpu_custom_call.1} parent=1 // pred_check
      _
    $region15: #{tpu_custom_call.1} parent=1 // pred_check_branch
      %18 = sbr.rel (0) target = $region17
    $region16: #{tpu_custom_call.1} parent=1 // pred_region
      _
    $region17: #{tpu_custom_call.1} parent=1 // pred_fallthru
      _
    // Predicated region
    $region18: #{tpu_custom_call.1} parent=1 // pred_check
      _
    $region19: #{tpu_custom_call.1} parent=1 // pred_check_branch
      %20 = sbr.rel (0) target = $region21
    $region20: #{tpu_custom_call.1} parent=1 // pred_region
      _
    $region21: #{tpu_custom_call.1} parent=1 // pred_fallthru
      _
    %v22 = vld [vmem:[%s0] sm:$0x3]
    %v23 = vpack.c.bf16 %v22, %v22
    %v24 = vld [vmem:[%s1] sm:$0xf]
    %v25 = vld [vmem:[%s1 + $0x4] sm:$0xf]
    %v26 = vld [vmem:[%s1 + $0x8] sm:$0x3]
    %v27 = vld [vmem:[%s2] sm:$0x1]
    %v29 = vlaneseq
    %v30 = vshrl.u32 %v29, 7
    %v31 = vsub.s32 0, %v30
    %v32 = vrot.slane %v27, %v31
    %v37 = vunpack.c.l.b16 %v24
    %v38 = vunpack.c.l.b16 %v25
    %v39 = vunpack.c.l.b16 %v26
    %v40 = vpack.c.b16 %v38, %v37
    %v41 = vpack.c.b16 %v39, %v39
    %vm43 = vcmask 162816
    %v45 = vsel %vm43, %v23, 0
    %vm47 = vcmask 1041408
    %v49 = vsel %vm47, %v41, 0
    %51 = vmatprep.subr.bf16.mxu0 0
    %52 = vmatpush1.bf16.msra.mxu0 %v40
    %53 = vmatprep.subr.bf16.mxu0 0
    %54 = vmatpush1.bf16.msra.mxu0 %v49
    %55 = vmatprep.subr.bf16.mxu0 0
    %56 = vmatpush1.bf16.msra.mxu0 0
    %57 = vmatprep.subr.bf16.mxu0 0
    %58 = vmatpush1.bf16.msra.mxu0 0
    %59 = vmatprep.subr.bf16.mxu0 0
    %60 = vmatpush1.bf16.msra.mxu0 0
    %61 = vmatprep.subr.bf16.mxu0 0
    %62 = vmatpush1.bf16.msra.mxu0 0
    %63 = vmatprep.subr.bf16.mxu0 0
    %64 = vmatpush1.bf16.msra.mxu0 0
    %65 = vmatprep.subr.bf16.mxu0 0
    %66 = vmatpush1.bf16.msra.mxu0 0
    %67 = vmatprep.subr.bf16.mxu0 0
    %68 = vmatpush1.bf16.msra.mxu0 0
    %69 = vmatprep.subr.bf16.mxu0 0
    %70 = vmatpush1.bf16.msra.mxu0 0
    %71 = vmatprep.subr.bf16.mxu0 0
    %72 = vmatpush1.bf16.msra.mxu0 0
    %73 = vmatprep.subr.bf16.mxu0 0
    %74 = vmatpush1.bf16.msra.mxu0 0
    %75 = vmatprep.subr.bf16.mxu0 0
    %76 = vmatpush1.bf16.msra.mxu0 0
    %77 = vmatprep.subr.bf16.mxu0 0
    %78 = vmatpush1.bf16.msra.mxu0 0
    %79 = vmatprep.subr.bf16.mxu0 0
    %80 = vmatpush1.bf16.msra.mxu0 0
    %81 = vmatprep.subr.bf16.mxu0 0
    %82 = vmatpush1.bf16.msra.mxu0 0
    %83 = vmatprep.mubr.bf16.mxu0 0
    %84 = vmatmul.mubr.bf16.gmra.mrb[0].mxu0 %v45
    %v85 = vpop.f32.mrb[0].mxu0
    %v86 = vadd.f32 %v32, %v85
    %v87 = vpop.f32.mrb[0].mxu0
    %v88 = vpop.f32.mrb[0].mxu0
    %v89 = vpop.f32.mrb[0].mxu0
    %90 = vdwg.mxu0
    %v91 = vpack.c.bf16 %v86, %v86
    %v92 = vld [vmem:[%s3] sm:$0xff]
    %v93 = vld [vmem:[%s3 + $0x8] sm:$0xff]
    %v94 = vld [vmem:[%s3 + $0x10] sm:$0xff]
    %v95 = vld [vmem:[%s3 + $0x18] sm:$0xf]
    %v96 = vld [vmem:[%s3 + $0x1c] sm:$0xff]
    %v97 = vld [vmem:[%s3 + $0x24] sm:$0xff]
    %v98 = vld [vmem:[%s3 + $0x2c] sm:$0xff]
    %v99 = vld [vmem:[%s3 + $0x34] sm:$0xf]
    %v100 = vld [vmem:[%s3 + $0x38] sm:$0xff]
    %v101 = vld [vmem:[%s3 + $0x40] sm:$0xff]
    %v102 = vld [vmem:[%s3 + $0x48] sm:$0xff]
    %v103 = vld [vmem:[%s3 + $0x50] sm:$0xf]
    %v104 = vld [vmem:[%s3 + $0x54] sm:$0xff]
    %v105 = vld [vmem:[%s3 + $0x5c] sm:$0xff]
    %v106 = vld [vmem:[%s3 + $0x64] sm:$0xff]
    %v107 = vld [vmem:[%s3 + $0x6c] sm:$0xf]
    %v108 = vld [vmem:[%s3 + $0x70] sm:$0xff]
    %v109 = vld [vmem:[%s3 + $0x78] sm:$0xff]
    %v110 = vld [vmem:[%s3 + $0x80] sm:$0xff]
    %v111 = vld [vmem:[%s3 + $0x88] sm:$0xf]
    %v112 = vld [vmem:[%s3 + $0x8c] sm:$0xff]
    %v113 = vld [vmem:[%s3 + $0x94] sm:$0xff]
    %v114 = vld [vmem:[%s3 + $0x9c] sm:$0xff]
    %v115 = vld [vmem:[%s3 + $0xa4] sm:$0xf]
    %v116 = vld [vmem:[%s3 + $0xa8] sm:$0xff]
    %v117 = vld [vmem:[%s3 + $0xb0] sm:$0xff]
    %v118 = vld [vmem:[%s3 + $0xb8] sm:$0xff]
    %v119 = vld [vmem:[%s3 + $0xc0] sm:$0xf]
    %v120 = vld [vmem:[%s3 + $0xc4] sm:$0xff]
    %v121 = vld [vmem:[%s3 + $0xcc] sm:$0xff]
    %v122 = vld [vmem:[%s3 + $0xd4] sm:$0xff]
    %v123 = vld [vmem:[%s3 + $0xdc] sm:$0xf]
    %v124 = vld [vmem:[%s3 + $0xe0] sm:$0xff]
    %v125 = vld [vmem:[%s3 + $0xe8] sm:$0xff]
    %v126 = vld [vmem:[%s3 + $0xf0] sm:$0xff]
    %v127 = vld [vmem:[%s3 + $0xf8] sm:$0xf]
    %v128 = vld [vmem:[%s3 + $0xfc] sm:$0xff]
    %v129 = vld [vmem:[%s3 + $0x104] sm:$0xff]
    %v130 = vld [vmem:[%s3 + $0x10c] sm:$0xff]
    %v131 = vld [vmem:[%s3 + $0x114] sm:$0xf]
    %v132 = vld [vmem:[%s3 + $0x118] sm:$0xff]
    %v133 = vld [vmem:[%s3 + $0x120] sm:$0xff]
    %v134 = vld [vmem:[%s3 + $0x128] sm:$0xff]
    %v135 = vld [vmem:[%s3 + $0x130] sm:$0xf]
    %v136 = vld [vmem:[%s3 + $0x134] sm:$0xff]
    %v137 = vld [vmem:[%s3 + $0x13c] sm:$0xff]
    %v138 = vld [vmem:[%s3 + $0x144] sm:$0xff]
    %v139 = vld [vmem:[%s3 + $0x14c] sm:$0xf]
    %v140 = vld [vmem:[%s3 + $0x150] sm:$0xff]
    %v141 = vld [vmem:[%s3 + $0x158] sm:$0xff]
    %v142 = vld [vmem:[%s3 + $0x160] sm:$0xff]
    %v143 = vld [vmem:[%s3 + $0x168] sm:$0xf]
    %v144 = vld [vmem:[%s3 + $0x16c] sm:$0xff]
    %v145 = vld [vmem:[%s3 + $0x174] sm:$0xff]
    %v146 = vld [vmem:[%s3 + $0x17c] sm:$0xff]
    %v147 = vld [vmem:[%s3 + $0x184] sm:$0xf]
    %v148 = vld [vmem:[%s3 + $0x188] sm:$0xff]
    %v149 = vld [vmem:[%s3 + $0x190] sm:$0xff]
    %v150 = vld [vmem:[%s3 + $0x198] sm:$0xff]
    %v151 = vld [vmem:[%s3 + $0x1a0] sm:$0xf]
    %v152 = vld [vmem:[%s3 + $0x1a4] sm:$0xff]
    %v153 = vld [vmem:[%s3 + $0x1ac] sm:$0xff]
    %v154 = vld [vmem:[%s3 + $0x1b4] sm:$0xff]
    %v155 = vld [vmem:[%s3 + $0x1bc] sm:$0xf]
    %v156 = vld [vmem:[%s4] sm:$0x7f]
    %v158 = vlaneseq
    %v159 = vshrl.u32 %v158, 7
    %v160 = vsub.s32 0, %v159
    %v161 = vrot.slane %v156, %v160
    %v162 = vlaneseq
    %v163 = vshrl.u32 %v162, 7
    %v164 = vsub.s32 1, %v163
    %v165 = vrot.slane %v156, %v164
    %v166 = vlaneseq
    %v167 = vshrl.u32 %v166, 7
    %v168 = vsub.s32 2, %v167
    %v169 = vrot.slane %v156, %v168
    %v170 = vlaneseq
    %v171 = vshrl.u32 %v170, 7
    %v172 = vsub.s32 3, %v171
    %v173 = vrot.slane %v156, %v172
    %v174 = vlaneseq
    %v175 = vshrl.u32 %v174, 7
    %v176 = vsub.s32 4, %v175
    %v177 = vrot.slane %v156, %v176
    %v178 = vlaneseq
    %v179 = vshrl.u32 %v178, 7
    %v180 = vsub.s32 5, %v179
    %v181 = vrot.slane %v156, %v180
    %v182 = vlaneseq
    %v183 = vshrl.u32 %v182, 7
    %v184 = vsub.s32 6, %v183
    %v185 = vrot.slane %v156, %v184
    %v257 = vunpack.c.l.b16 %v92
    %v258 = vunpack.c.h.b16 %v92
    %v259 = vunpack.c.l.b16 %v93
    %v260 = vunpack.c.h.b16 %v93
    %v261 = vunpack.c.l.b16 %v94
    %v262 = vunpack.c.h.b16 %v94
    %v263 = vunpack.c.l.b16 %v95
    %v264 = vunpack.c.l.b16 %v96
    %v265 = vunpack.c.h.b16 %v96
    %v266 = vunpack.c.l.b16 %v97
    %v267 = vunpack.c.h.b16 %v97
    %v268 = vunpack.c.l.b16 %v98
    %v269 = vunpack.c.h.b16 %v98
    %v270 = vunpack.c.l.b16 %v99
    %v271 = vunpack.c.l.b16 %v100
    %v272 = vunpack.c.h.b16 %v100
    %v273 = vunpack.c.l.b16 %v101
    %v274 = vunpack.c.h.b16 %v101
    %v275 = vunpack.c.l.b16 %v102
    %v276 = vunpack.c.h.b16 %v102
    %v277 = vunpack.c.l.b16 %v103
    %v278 = vunpack.c.l.b16 %v104
    %v279 = vunpack.c.h.b16 %v104
    %v280 = vunpack.c.l.b16 %v105
    %v281 = vunpack.c.h.b16 %v105
    %v282 = vunpack.c.l.b16 %v106
    %v283 = vunpack.c.h.b16 %v106
    %v284 = vunpack.c.l.b16 %v107
    %v285 = vunpack.c.l.b16 %v108
    %v286 = vunpack.c.h.b16 %v108
    %v287 = vunpack.c.l.b16 %v109
    %v288 = vunpack.c.h.b16 %v109
    %v289 = vunpack.c.l.b16 %v110
    %v290 = vunpack.c.h.b16 %v110
    %v291 = vunpack.c.l.b16 %v111
    %v292 = vunpack.c.l.b16 %v112
    %v293 = vunpack.c.h.b16 %v112
    %v294 = vunpack.c.l.b16 %v113
    %v295 = vunpack.c.h.b16 %v113
    %v296 = vunpack.c.l.b16 %v114
    %v297 = vunpack.c.h.b16 %v114
    %v298 = vunpack.c.l.b16 %v115
    %v299 = vunpack.c.l.b16 %v116
    %v300 = vunpack.c.h.b16 %v116
    %v301 = vunpack.c.l.b16 %v117
    %v302 = vunpack.c.h.b16 %v117
    %v303 = vunpack.c.l.b16 %v118
    %v304 = vunpack.c.h.b16 %v118
    %v305 = vunpack.c.l.b16 %v119
    %v306 = vunpack.c.l.b16 %v120
    %v307 = vunpack.c.h.b16 %v120
    %v308 = vunpack.c.l.b16 %v121
    %v309 = vunpack.c.h.b16 %v121
    %v310 = vunpack.c.l.b16 %v122
    %v311 = vunpack.c.h.b16 %v122
    %v312 = vunpack.c.l.b16 %v123
    %v313 = vunpack.c.l.b16 %v124
    %v314 = vunpack.c.h.b16 %v124
    %v315 = vunpack.c.l.b16 %v125
    %v316 = vunpack.c.h.b16 %v125
    %v317 = vunpack.c.l.b16 %v126
    %v318 = vunpack.c.h.b16 %v126
    %v319 = vunpack.c.l.b16 %v127
    %v320 = vunpack.c.l.b16 %v128
    %v321 = vunpack.c.h.b16 %v128
    %v322 = vunpack.c.l.b16 %v129
    %v323 = vunpack.c.h.b16 %v129
    %v324 = vunpack.c.l.b16 %v130
    %v325 = vunpack.c.h.b16 %v130
    %v326 = vunpack.c.l.b16 %v131
    %v327 = vunpack.c.l.b16 %v132
    %v328 = vunpack.c.h.b16 %v132
    %v329 = vunpack.c.l.b16 %v133
    %v330 = vunpack.c.h.b16 %v133
    %v331 = vunpack.c.l.b16 %v134
    %v332 = vunpack.c.h.b16 %v134
    %v333 = vunpack.c.l.b16 %v135
    %v334 = vunpack.c.l.b16 %v136
    %v335 = vunpack.c.h.b16 %v136
    %v336 = vunpack.c.l.b16 %v137
    %v337 = vunpack.c.h.b16 %v137
    %v338 = vunpack.c.l.b16 %v138
    %v339 = vunpack.c.h.b16 %v138
    %v340 = vunpack.c.l.b16 %v139
    %v341 = vunpack.c.l.b16 %v140
    %v342 = vunpack.c.h.b16 %v140
    %v343 = vunpack.c.l.b16 %v141
    %v344 = vunpack.c.h.b16 %v141
    %v345 = vunpack.c.l.b16 %v142
    %v346 = vunpack.c.h.b16 %v142
    %v347 = vunpack.c.l.b16 %v143
    %v348 = vunpack.c.l.b16 %v144
    %v349 = vunpack.c.h.b16 %v144
    %v350 = vunpack.c.l.b16 %v145
    %v351 = vunpack.c.h.b16 %v145
    %v352 = vunpack.c.l.b16 %v146
    %v353 = vunpack.c.h.b16 %v146
    %v354 = vunpack.c.l.b16 %v147
    %v355 = vunpack.c.l.b16 %v148
    %v356 = vunpack.c.h.b16 %v148
    %v357 = vunpack.c.l.b16 %v149
    %v358 = vunpack.c.h.b16 %v149
    %v359 = vunpack.c.l.b16 %v150
    %v360 = vunpack.c.h.b16 %v150
    %v361 = vunpack.c.l.b16 %v151
    %v362 = vunpack.c.l.b16 %v152
    %v363 = vunpack.c.h.b16 %v152
    %v364 = vunpack.c.l.b16 %v153
    %v365 = vunpack.c.h.b16 %v153
    %v366 = vunpack.c.l.b16 %v154
    %v367 = vunpack.c.h.b16 %v154
    %v368 = vunpack.c.l.b16 %v155
    %v369 = vpack.c.b16 %v264, %v257
    %v370 = vpack.c.b16 %v265, %v258
    %v371 = vpack.c.b16 %v266, %v259
    %v372 = vpack.c.b16 %v267, %v260
    %v373 = vpack.c.b16 %v268, %v261
    %v374 = vpack.c.b16 %v269, %v262
    %v375 = vpack.c.b16 %v270, %v263
    %v376 = vpack.c.b16 %v278, %v271
    %v377 = vpack.c.b16 %v279, %v272
    %v378 = vpack.c.b16 %v280, %v273
    %v379 = vpack.c.b16 %v281, %v274
    %v380 = vpack.c.b16 %v282, %v275
    %v381 = vpack.c.b16 %v283, %v276
    %v382 = vpack.c.b16 %v284, %v277
    %v383 = vpack.c.b16 %v292, %v285
    %v384 = vpack.c.b16 %v293, %v286
    %v385 = vpack.c.b16 %v294, %v287
    %v386 = vpack.c.b16 %v295, %v288
    %v387 = vpack.c.b16 %v296, %v289
    %v388 = vpack.c.b16 %v297, %v290
    %v389 = vpack.c.b16 %v298, %v291
    %v390 = vpack.c.b16 %v306, %v299
    %v391 = vpack.c.b16 %v307, %v300
    %v392 = vpack.c.b16 %v308, %v301
    %v393 = vpack.c.b16 %v309, %v302
    %v394 = vpack.c.b16 %v310, %v303
    %v395 = vpack.c.b16 %v311, %v304
    %v396 = vpack.c.b16 %v312, %v305
    %v397 = vpack.c.b16 %v320, %v313
    %v398 = vpack.c.b16 %v321, %v314
    %v399 = vpack.c.b16 %v322, %v315
    %v400 = vpack.c.b16 %v323, %v316
    %v401 = vpack.c.b16 %v324, %v317
    %v402 = vpack.c.b16 %v325, %v318
    %v403 = vpack.c.b16 %v326, %v319
    %v404 = vpack.c.b16 %v334, %v327
    %v405 = vpack.c.b16 %v335, %v328
    %v406 = vpack.c.b16 %v336, %v329
    %v407 = vpack.c.b16 %v337, %v330
    %v408 = vpack.c.b16 %v338, %v331
    %v409 = vpack.c.b16 %v339, %v332
    %v410 = vpack.c.b16 %v340, %v333
    %v411 = vpack.c.b16 %v348, %v341
    %v412 = vpack.c.b16 %v349, %v342
    %v413 = vpack.c.b16 %v350, %v343
    %v414 = vpack.c.b16 %v351, %v344
    %v415 = vpack.c.b16 %v352, %v345
    %v416 = vpack.c.b16 %v353, %v346
    %v417 = vpack.c.b16 %v354, %v347
    %v418 = vpack.c.b16 %v362, %v355
    %v419 = vpack.c.b16 %v363, %v356
    %v420 = vpack.c.b16 %v364, %v357
    %v421 = vpack.c.b16 %v365, %v358
    %v422 = vpack.c.b16 %v366, %v359
    %v423 = vpack.c.b16 %v367, %v360
    %v424 = vpack.c.b16 %v368, %v361
    %481 = vmatprep.subr.bf16.mxu0 %v370
    %482 = vmatpush1.bf16.msra.mxu0 %v369
    %483 = vmatprep.subr.bf16.mxu0 %v377
    %484 = vmatpush1.bf16.msra.mxu0 %v376
    %485 = vmatprep.subr.bf16.mxu0 %v384
    %486 = vmatpush1.bf16.msra.mxu0 %v383
    %487 = vmatprep.subr.bf16.mxu0 %v391
    %488 = vmatpush1.bf16.msra.mxu0 %v390
    %489 = vmatprep.subr.bf16.mxu0 %v398
    %490 = vmatpush1.bf16.msra.mxu0 %v397
    %491 = vmatprep.subr.bf16.mxu0 %v405
    %492 = vmatpush1.bf16.msra.mxu0 %v404
    %493 = vmatprep.subr.bf16.mxu0 %v412
    %494 = vmatpush1.bf16.msra.mxu0 %v411
    %495 = vmatprep.subr.bf16.mxu0 %v419
    %496 = vmatpush1.bf16.msra.mxu0 %v418
    %497 = vmatprep.subr.bf16.mxu0 0
    %498 = vmatpush1.bf16.msra.mxu0 0
    %499 = vmatprep.subr.bf16.mxu0 0
    %500 = vmatpush1.bf16.msra.mxu0 0
    %501 = vmatprep.subr.bf16.mxu0 0
    %502 = vmatpush1.bf16.msra.mxu0 0
    %503 = vmatprep.subr.bf16.mxu0 0
    %504 = vmatpush1.bf16.msra.mxu0 0
    %505 = vmatprep.subr.bf16.mxu0 0
    %506 = vmatpush1.bf16.msra.mxu0 0
    %507 = vmatprep.subr.bf16.mxu0 0
    %508 = vmatpush1.bf16.msra.mxu0 0
    %509 = vmatprep.subr.bf16.mxu0 0
    %510 = vmatpush1.bf16.msra.mxu0 0
    %511 = vmatprep.subr.bf16.mxu0 0
    %512 = vmatpush1.bf16.msra.mxu0 0
    %513 = vmatprep.mubr.bf16.mxu0 0
    %514 = vmatmul.mubr.bf16.gmra.mrb[0].mxu0 %v91
    %v515 = vpop.f32.mrb[0].mxu0
    %v516 = vadd.f32 %v161, %v515
    %v517 = vpop.f32.mrb[0].mxu0
    %v518 = vadd.f32 %v165, %v517
    %v519 = vpop.f32.mrb[0].mxu0
    %v520 = vpop.f32.mrb[0].mxu0
    %521 = vdwg.mxu0
    %522 = vmatprep.subr.bf16.mxu0 %v372
    %523 = vmatpush1.bf16.msra.mxu0 %v371
    %524 = vmatprep.subr.bf16.mxu0 %v379
    %525 = vmatpush1.bf16.msra.mxu0 %v378
    %526 = vmatprep.subr.bf16.mxu0 %v386
    %527 = vmatpush1.bf16.msra.mxu0 %v385
    %528 = vmatprep.subr.bf16.mxu0 %v393
    %529 = vmatpush1.bf16.msra.mxu0 %v392
    %530 = vmatprep.subr.bf16.mxu0 %v400
    %531 = vmatpush1.bf16.msra.mxu0 %v399
    %532 = vmatprep.subr.bf16.mxu0 %v407
    %533 = vmatpush1.bf16.msra.mxu0 %v406
    %534 = vmatprep.subr.bf16.mxu0 %v414
    %535 = vmatpush1.bf16.msra.mxu0 %v413
    %536 = vmatprep.subr.bf16.mxu0 %v421
    %537 = vmatpush1.bf16.msra.mxu0 %v420
    %538 = vmatprep.subr.bf16.mxu0 0
    %539 = vmatpush1.bf16.msra.mxu0 0
    %540 = vmatprep.subr.bf16.mxu0 0
    %541 = vmatpush1.bf16.msra.mxu0 0
    %542 = vmatprep.subr.bf16.mxu0 0
    %543 = vmatpush1.bf16.msra.mxu0 0
    %544 = vmatprep.subr.bf16.mxu0 0
    %545 = vmatpush1.bf16.msra.mxu0 0
    %546 = vmatprep.subr.bf16.mxu0 0
    %547 = vmatpush1.bf16.msra.mxu0 0
    %548 = vmatprep.subr.bf16.mxu0 0
    %549 = vmatpush1.bf16.msra.mxu0 0
    %550 = vmatprep.subr.bf16.mxu0 0
    %551 = vmatpush1.bf16.msra.mxu0 0
    %552 = vmatprep.subr.bf16.mxu0 0
    %553 = vmatpush1.bf16.msra.mxu0 0
    %554 = vmatprep.mubr.bf16.mxu0 0
    %555 = vmatmul.mubr.bf16.gmra.mrb[0].mxu0 %v91
    %v556 = vpop.f32.mrb[0].mxu0
    %v557 = vadd.f32 %v169, %v556
    %v558 = vpop.f32.mrb[0].mxu0
    %v559 = vadd.f32 %v173, %v558
    %v560 = vpop.f32.mrb[0].mxu0
    %v561 = vpop.f32.mrb[0].mxu0
    %562 = vdwg.mxu0
    %563 = vmatprep.subr.bf16.mxu0 %v374
    %564 = vmatpush1.bf16.msra.mxu0 %v373
    %565 = vmatprep.subr.bf16.mxu0 %v381
    %566 = vmatpush1.bf16.msra.mxu0 %v380
    %567 = vmatprep.subr.bf16.mxu0 %v388
    %568 = vmatpush1.bf16.msra.mxu0 %v387
    %569 = vmatprep.subr.bf16.mxu0 %v395
    %570 = vmatpush1.bf16.msra.mxu0 %v394
    %571 = vmatprep.subr.bf16.mxu0 %v402
    %572 = vmatpush1.bf16.msra.mxu0 %v401
    %573 = vmatprep.subr.bf16.mxu0 %v409
    %574 = vmatpush1.bf16.msra.mxu0 %v408
    %575 = vmatprep.subr.bf16.mxu0 %v416
    %576 = vmatpush1.bf16.msra.mxu0 %v415
    %577 = vmatprep.subr.bf16.mxu0 %v423
    %578 = vmatpush1.bf16.msra.mxu0 %v422
    %579 = vmatprep.subr.bf16.mxu0 0
    %580 = vmatpush1.bf16.msra.mxu0 0
    %581 = vmatprep.subr.bf16.mxu0 0
    %582 = vmatpush1.bf16.msra.mxu0 0
    %583 = vmatprep.subr.bf16.mxu0 0
    %584 = vmatpush1.bf16.msra.mxu0 0
    %585 = vmatprep.subr.bf16.mxu0 0
    %586 = vmatpush1.bf16.msra.mxu0 0
    %587 = vmatprep.subr.bf16.mxu0 0
    %588 = vmatpush1.bf16.msra.mxu0 0
    %589 = vmatprep.subr.bf16.mxu0 0
    %590 = vmatpush1.bf16.msra.mxu0 0
    %591 = vmatprep.subr.bf16.mxu0 0
    %592 = vmatpush1.bf16.msra.mxu0 0
    %593 = vmatprep.subr.bf16.mxu0 0
    %594 = vmatpush1.bf16.msra.mxu0 0
    %595 = vmatprep.mubr.bf16.mxu0 0
    %596 = vmatmul.mubr.bf16.gmra.mrb[0].mxu0 %v91
    %v597 = vpop.f32.mrb[0].mxu0
    %v598 = vadd.f32 %v177, %v597
    %v599 = vpop.f32.mrb[0].mxu0
    %v600 = vadd.f32 %v181, %v599
    %v601 = vpop.f32.mrb[0].mxu0
    %v602 = vpop.f32.mrb[0].mxu0
    %603 = vdwg.mxu0
    %604 = vmatprep.subr.bf16.mxu0 0
    %605 = vmatpush1.bf16.msra.mxu0 %v375
    %606 = vmatprep.subr.bf16.mxu0 0
    %607 = vmatpush1.bf16.msra.mxu0 %v382
    %608 = vmatprep.subr.bf16.mxu0 0
    %609 = vmatpush1.bf16.msra.mxu0 %v389
    %610 = vmatprep.subr.bf16.mxu0 0
    %611 = vmatpush1.bf16.msra.mxu0 %v396
    %612 = vmatprep.subr.bf16.mxu0 0
    %613 = vmatpush1.bf16.msra.mxu0 %v403
    %614 = vmatprep.subr.bf16.mxu0 0
    %615 = vmatpush1.bf16.msra.mxu0 %v410
    %616 = vmatprep.subr.bf16.mxu0 0
    %617 = vmatpush1.bf16.msra.mxu0 %v417
    %618 = vmatprep.subr.bf16.mxu0 0
    %619 = vmatpush1.bf16.msra.mxu0 %v424
    %620 = vmatprep.subr.bf16.mxu0 0
    %621 = vmatpush1.bf16.msra.mxu0 0
    %622 = vmatprep.subr.bf16.mxu0 0
    %623 = vmatpush1.bf16.msra.mxu0 0
    %624 = vmatprep.subr.bf16.mxu0 0
    %625 = vmatpush1.bf16.msra.mxu0 0
    %626 = vmatprep.subr.bf16.mxu0 0
    %627 = vmatpush1.bf16.msra.mxu0 0
    %628 = vmatprep.subr.bf16.mxu0 0
    %629 = vmatpush1.bf16.msra.mxu0 0
    %630 = vmatprep.subr.bf16.mxu0 0
    %631 = vmatpush1.bf16.msra.mxu0 0
    %632 = vmatprep.subr.bf16.mxu0 0
    %633 = vmatpush1.bf16.msra.mxu0 0
    %634 = vmatprep.subr.bf16.mxu0 0
    %635 = vmatpush1.bf16.msra.mxu0 0
    %636 = vmatprep.mubr.bf16.mxu0 0
    %637 = vmatmul.mubr.bf16.gmra.mrb[0].mxu0 %v91
    %v638 = vpop.f32.mrb[0].mxu0
    %v639 = vadd.f32 %v185, %v638
    %v640 = vpop.f32.mrb[0].mxu0
    %v641 = vpop.f32.mrb[0].mxu0
    %v642 = vpop.f32.mrb[0].mxu0
    %643 = vdwg.mxu0
    %v644 = vmul.f32 %v516, 0.5
    %v645 = vmul.f32 %v518, 0.5
    %v646 = vmul.f32 %v557, 0.5
    %v647 = vmul.f32 %v559, 0.5
    %v648 = vmul.f32 %v598, 0.5
    %v649 = vmul.f32 %v600, 0.5
    %v650 = vmul.f32 %v639, 0.5
    %v651 = vtanh.pop %v644
    %v652 = vtanh.pop %v645
    %v653 = vtanh.pop %v646
    %v654 = vtanh.pop %v647
    %v655 = vtanh.pop %v648
    %v656 = vtanh.pop %v649
    %v657 = vtanh.pop %v650
    %v658 = vmul.f32 %v651, 0.5
    %v659 = vmul.f32 %v652, 0.5
    %v660 = vmul.f32 %v653, 0.5
    %v661 = vmul.f32 %v654, 0.5
    %v662 = vmul.f32 %v655, 0.5
    %v663 = vmul.f32 %v656, 0.5
    %v664 = vmul.f32 %v657, 0.5
    %v665 = vadd.f32 %v658, 0.5
    %v666 = vadd.f32 %v659, 0.5
    %v667 = vadd.f32 %v660, 0.5
    %v668 = vadd.f32 %v661, 0.5
    %v669 = vadd.f32 %v662, 0.5
    %v670 = vadd.f32 %v663, 0.5
    %v671 = vadd.f32 %v664, 0.5
    %v679 = vcombine.low %v665, %v666
    %v680 = vcombine.low %v667, %v668
    %v682 = vunpack.c.l.s4 1983009808
    %v683 = vunpack.c.0.s8 %v682
    %v684 = vlaneseq
    %v685 = vshrl.u32 %v684, 7
    %v686 = vsub.s32 %v683, %v685
    %v687 = vrot.slane %v679, %v686
    %v689 = vunpack.c.l.s4 1983009808
    %v690 = vunpack.c.0.s8 %v689
    %v691 = vlaneseq
    %v692 = vshrl.u32 %v691, 7
    %v693 = vsub.s32 %v690, %v692
    %v694 = vrot.slane %v680, %v693
    %v695 = vcombine.low %v687, %v694
    %v696 = vcombine.low %v669, %v670
    %v698 = vunpack.c.l.s4 1983009808
    %v699 = vunpack.c.0.s8 %v698
    %v700 = vlaneseq
    %v701 = vshrl.u32 %v700, 7
    %v702 = vsub.s32 %v699, %v701
    %v703 = vrot.slane %v696, %v702
    %v705 = vunpack.c.l.s4 1983009808
    %v706 = vunpack.c.0.s8 %v705
    %v707 = vlaneseq
    %v708 = vshrl.u32 %v707, 7
    %v709 = vsub.s32 %v706, %v708
    %v710 = vrot.slane %v671, %v709
    %v711 = vcombine.low %v703, %v710
    %714 = vst [vmem:[#allocation2] sm:$0xff] %v695
    %vm715 = vcmask 1043458
    %vm716 = vmor %vm715, %vm47
    %vm717 = vcmask 128004
    %vm718 = vmor %vm717, %vm716
    %719 = vst.msk [vmem:[#allocation2 + $0x8] sm:$0x3f] %vm718, %v711
    // Predicated region
    $region22: #{tpu_custom_call.1} parent=1 // pred_check
      _
    $region23: #{tpu_custom_call.1} parent=1 // pred_check_branch
      %721 = sbr.rel (0) target = $region25
    $region24: #{tpu_custom_call.1} parent=1 // pred_region
      %s723 = ssub.s32 224, 224
      %724 = vsyncadd [#allocation3], %s723
      %s726 = sshll.u32 [#allocation2], 4
      %s727 = int_to_ptr.vmem [resolvable:$true] %s726
      %729 = dma.vmem_to_hbm [thread:$0]  %s727, 224, %s5, [#allocation3]
    $region25: #{tpu_custom_call.1} parent=1 // pred_fallthru
      _
    // Predicated region
    $region26: #{tpu_custom_call.1} parent=1 // pred_check
      _
    $region27: #{tpu_custom_call.1} parent=1 // pred_check_branch
      %731 = sbr.rel (0) target = $region29
    $region28: #{tpu_custom_call.1} parent=1 // pred_region
      %732 = dma.done [#allocation3], 224
    $region29: #{tpu_custom_call.1} parent=1 // pred_fallthru
      _
    %733 = vsyncpa [#allocation3], 1

</llo_original>
